<compile_context>
chip_gen: v5e
topology: v5e:2x2
jax: 0.10.0
libtpu: 0.0.40
codegen_flags: <defaults>
</compile_context>

<pallas_src>
import functools

import jax
import jax.numpy as jnp
from jax.experimental import pallas as pl
from jax.experimental.pallas import tpu as pltpu


def _cbam_kernel(x_ref, w1_ref, w2_ref, m_ref, o_ref):
    """CBAM forward for NB samples, NCHW-native flattened layout.

    x_ref : (NB, C, HW)   input block (H*W in lanes -> lane-dense for any C)
    w1_ref: (C, Cr)       shared-MLP fc1 (1x1 conv, no bias)
    w2_ref: (Cr, C)       shared-MLP fc2 (1x1 conv, no bias)
    m_ref : (2*HW, HW)    7x7 spatial conv packed as a matmul operand
                          (rows [0,HW): channel-mean taps, [HW,2HW): channel-max taps)
    o_ref : (NB, C, HW)   output block
    """
    x = x_ref[...]
    nb = x.shape[0]

    # ---------------- Channel attention ----------------
    # AdaptiveAvgPool2d(1) / AdaptiveMaxPool2d(1): lane reductions over H*W.
    avg = jnp.mean(x, axis=-1)                           # (NB, C)
    mx = jnp.max(x, axis=-1)                             # (NB, C)
    pooled = jnp.concatenate([avg, mx], axis=0)          # (2*NB, C): one matmul per FC

    hid = jnp.maximum(
        jnp.dot(pooled, w1_ref[...], preferred_element_type=jnp.float32), 0.0)  # (2NB, Cr)
    y = jnp.dot(hid, w2_ref[...], preferred_element_type=jnp.float32)           # (2NB, C)
    ca = jax.nn.sigmoid(y[:nb] + y[nb:])                 # (NB, C)

    out = x * ca[:, :, None]                             # out = x * ca(x)

    # ---------------- Spatial attention ----------------
    c_avg = jnp.mean(out, axis=1)                        # (NB, HW)  sublane reduction
    c_max = jnp.max(out, axis=1)                         # (NB, HW)
    cat = jnp.concatenate([c_avg, c_max], axis=-1)       # (NB, 2*HW), 128-aligned concat

    # Whole 7x7 conv (2 -> 1 ch, pad 3, no bias) as a single MXU matmul.
    conv = jnp.dot(cat, m_ref[...], preferred_element_type=jnp.float32)  # (NB, HW)
    sa = jax.nn.sigmoid(conv)                            # (NB, HW)

    o_ref[...] = out * sa[:, None, :]                    # result = out * sa(out)


def _spatial_conv_matrix(w_sa, H, W):
    """Pack the 7x7 (2->1 ch, pad=3, no bias) conv into a (2*H*W, H*W) matmul operand.

    w_sa: (2, 7, 7) f32; channel 0 multiplies the channel-mean map, channel 1 the
    channel-max map (matches torch.cat([avg_out, max_out], dim=1)).
    conv[n, oy*W+ox] = sum_q cat[n, q] * M[q, oy*W+ox], cat = [mean | max] flat maps.
    """
    hw = H * W
    dy = jnp.arange(H)[:, None] - jnp.arange(H)[None, :]     # iy - oy   (H, H)
    dx = jnp.arange(W)[:, None] - jnp.arange(W)[None, :]     # ix - ox   (W, W)
    valid = (jnp.abs(dy)[:, None, :, None] <= 3) & (jnp.abs(dx)[None, :, None, :] <= 3)
    ky = jnp.clip(dy + 3, 0, 6)
    kx = jnp.clip(dx + 3, 0, 6)

    def pack(w_c):                                           # (7, 7) indexed [ky, kx]
        vals = w_c[ky[:, None, :, None], kx[None, :, None, :]]   # (H, W, H, W)
        return jnp.where(valid, vals, 0.0).reshape(hw, hw)       # rows=input q, cols=output p

    return jnp.concatenate([pack(w_sa[0]), pack(w_sa[1])], axis=0)   # (2*HW, HW)


def _pick_block_batch(n, per_sample_bytes, target_bytes=2 << 20):
    """Largest divisor of n with block <= ~2 MiB while keeping >= 2 grid steps."""
    cap = max(1, target_bytes // max(per_sample_bytes, 1))
    nb = 1
    for d in range(1, n + 1):
        if n % d == 0 and d <= cap and n // d >= 2:
            nb = d
    return nb


def cbam_forward(x_nchw, params):
    """x_nchw: (N, C, H, W).  Returns (N, C, H, W)."""
    N, C, H, W = x_nchw.shape
    HW = H * W
    x = x_nchw.reshape(N, C, HW).astype(jnp.float32)          # free contiguous reshape
    w1 = params["w_fc1"].astype(jnp.float32)                  # (C, Cr)
    w2 = params["w_fc2"].astype(jnp.float32)                  # (Cr, C)
    cr = w1.shape[1]
    m = _spatial_conv_matrix(params["w_sa"].astype(jnp.float32), H, W)   # (2HW, HW)

    nb = _pick_block_batch(N, C * HW * 4)
    grid = (N // nb,)

    block_bytes = nb * C * HW * 4
    operand_bytes = 4 * (C * cr + cr * C + 2 * HW * HW)
    # in + out double-buffered + resident operands + kernel temporaries + slack,
    # clamped to 48 MiB so it fits v7x's 64 MiB VMEM as well as v5e/v6e.
    vmem_limit = int(min(max(8 * block_bytes + 2 * operand_bytes + (2 << 20), 16 << 20),
                         48 << 20))

    flops = N * (8 * C * cr + 4 * HW * HW + 6 * C * HW)
    transcendentals = N * (C + HW)
    bytes_accessed = 4 * (2 * N * C * HW) + operand_bytes

    out = pl.pallas_call(
        _cbam_kernel,
        out_shape=jax.ShapeDtypeStruct((N, C, HW), jnp.float32),
        grid=grid,
        in_specs=[
            pl.BlockSpec((nb, C, HW), lambda n: (n, 0, 0)),    # x, batch-blocked
            pl.BlockSpec((C, cr), lambda n: (0, 0)),           # fc1 (resident)
            pl.BlockSpec((cr, C), lambda n: (0, 0)),           # fc2 (resident)
            pl.BlockSpec((2 * HW, HW), lambda n: (0, 0)),      # conv operand (resident)
        ],
        out_specs=pl.BlockSpec((nb, C, HW), lambda n: (n, 0, 0)),
        compiler_params=pltpu.CompilerParams(
            dimension_semantics=("parallel",),
            vmem_limit_bytes=vmem_limit,
        ),
        cost_estimate=pl.CostEstimate(
            flops=flops, transcendentals=transcendentals,
            bytes_accessed=bytes_accessed),
    )(x, w1, w2, m)

    return out.reshape(N, C, H, W)


def init_params(key, in_planes, ratio=16):
    cr = max(in_planes // ratio, 1)
    k1, k2, k3 = jax.random.split(key, 3)
    return {
        "w_fc1": 0.3 * jax.random.normal(k1, (in_planes, cr), jnp.float32),
        "w_fc2": 0.3 * jax.random.normal(k2, (cr, in_planes), jnp.float32),
        "w_sa": 0.3 * jax.random.normal(k3, (2, 7, 7), jnp.float32),
    }


def cbam_reference(x, p):
    """Pure-JAX reference of the PyTorch CBAM forward (NCHW)."""
    avg = jnp.mean(x, axis=(2, 3))                     # (N, C)
    mx = jnp.max(x, axis=(2, 3))                       # (N, C)

    def mlp(v):
        return jnp.maximum(v @ p["w_fc1"], 0.0) @ p["w_fc2"]

    ca = jax.nn.sigmoid(mlp(avg) + mlp(mx))[:, :, None, None]
    out = x * ca

    c_avg = jnp.mean(out, axis=1, keepdims=True)
    c_max = jnp.max(out, axis=1, keepdims=True)
    sa_in = jnp.concatenate([c_avg, c_max], axis=1)    # (N, 2, H, W)
    sa = jax.lax.conv_general_dilated(
        sa_in, p["w_sa"][None], (1, 1), "SAME",
        dimension_numbers=("NCHW", "OIHW", "NCHW"))
    sa = jax.nn.sigmoid(sa)
    return out * sa


if __name__ == "__main__":
    key = jax.random.PRNGKey(0)
    kx, kp = jax.random.split(key)

    N, C, H, W = 2, 32, 16, 16                         # ratio=16 -> hidden = 2
    x = jax.random.normal(kx, (N, C, H, W), jnp.float32)
    params = init_params(kp, C, ratio=16)

    run = jax.jit(functools.partial(cbam_forward, params=params))
    out = jax.block_until_ready(run(x))

    ref = cbam_reference(x, params)
    assert out.shape == ref.shape == (N, C, H, W)
    err = float(jnp.max(jnp.abs(out - ref)))
    assert jnp.allclose(out, ref, atol=2e-3, rtol=2e-3), f"max abs err = {err}"

    print("KERNEL_OK")
</pallas_src>

<mosaic_0001>
module attributes {stable_mosaic.version = 11 : i64} {
  func.func @_cbam_kernel(%arg0: i32, %arg1: memref<1x32x256xf32, #tpu.memory_space<vmem>>, %arg2: memref<32x2xf32, #tpu.memory_space<vmem>>, %arg3: memref<2x32xf32, #tpu.memory_space<vmem>>, %arg4: memref<512x256xf32, #tpu.memory_space<vmem>>, %arg5: memref<1x32x256xf32, #tpu.memory_space<vmem>>) attributes {dimension_semantics = [#tpu.dimension_semantics<parallel>], iteration_bounds = array<i64: 2>, scalar_prefetch = 0 : i64, scratch_operands = 0 : i64, tpu.core_type = #tpu.core_type<tc>, window_params = [{transform_indices = @transform_0, window_bounds = array<i64: 1, 32, 256>}, {pipeline_mode = #tpu.pipeline_mode<synchronous>, transform_indices = @transform_1, window_bounds = array<i64: 32, 2>}, {pipeline_mode = #tpu.pipeline_mode<synchronous>, transform_indices = @transform_2, window_bounds = array<i64: 2, 32>}, {pipeline_mode = #tpu.pipeline_mode<synchronous>, transform_indices = @transform_3, window_bounds = array<i64: 512, 256>}, {transform_indices = @transform_4, window_bounds = array<i64: 1, 32, 256>}]} {
    %c0 = arith.constant 0 : index
    %c0_0 = arith.constant 0 : index
    %c0_1 = arith.constant 0 : index
    %0 = vector.load %arg1[%c0, %c0_0, %c0_1] : memref<1x32x256xf32, #tpu.memory_space<vmem>>, vector<1x32x256xf32>
    %cst = arith.constant dense<0.000000e+00> : vector<1x32xf32>
    %1 = vector.multi_reduction <add>, %0, %cst [2] : vector<1x32x256xf32> to vector<1x32xf32>
    %cst_2 = arith.constant 2.560000e+02 : f32
    %2 = vector.broadcast %cst_2 : f32 to vector<1x32xf32>
    %3 = arith.divf %1, %2 : vector<1x32xf32>
    %cst_3 = arith.constant dense<0xFF800000> : vector<1x32xf32>
    %4 = vector.multi_reduction <maximumf>, %0, %cst_3 [2] : vector<1x32x256xf32> to vector<1x32xf32>
    %5 = tpu.concatenate %3, %4 in 0 : vector<1x32xf32>, vector<1x32xf32> -> vector<2x32xf32>
    %c0_4 = arith.constant 0 : index
    %c0_5 = arith.constant 0 : index
    %6 = vector.load %arg2[%c0_4, %c0_5] : memref<32x2xf32, #tpu.memory_space<vmem>>, vector<32x2xf32>
    %cst_6 = arith.constant dense<0.000000e+00> : vector<2x2xf32>
    %7 = tpu.matmul %5, %6, %cst_6 {dimension_numbers = #tpu.dot_dimension_numbers<[1], [0], [0], [1], [0, 0, 1, 1], [], []>} : vector<2x32xf32>, vector<32x2xf32>, vector<2x2xf32> -> vector<2x2xf32>
    %cst_7 = arith.constant 0.000000e+00 : f32
    %8 = vector.broadcast %cst_7 : f32 to vector<2x2xf32>
    %9 = arith.maximumf %7, %8 : vector<2x2xf32>
    %c0_8 = arith.constant 0 : index
    %c0_9 = arith.constant 0 : index
    %10 = vector.load %arg3[%c0_8, %c0_9] : memref<2x32xf32, #tpu.memory_space<vmem>>, vector<2x32xf32>
    %cst_10 = arith.constant dense<0.000000e+00> : vector<2x32xf32>
    %11 = tpu.matmul %9, %10, %cst_10 {dimension_numbers = #tpu.dot_dimension_numbers<[1], [0], [0], [1], [0, 0, 1, 1], [], []>} : vector<2x2xf32>, vector<2x32xf32>, vector<2x32xf32> -> vector<2x32xf32>
    %12 = vector.extract_strided_slice %11 {offsets = [0, 0], sizes = [1, 32], strides = [1, 1]} : vector<2x32xf32> to vector<1x32xf32>
    %13 = vector.extract_strided_slice %11 {offsets = [1, 0], sizes = [1, 32], strides = [1, 1]} : vector<2x32xf32> to vector<1x32xf32>
    %14 = arith.addf %12, %13 : vector<1x32xf32>
    %15 = arith.negf %14 : vector<1x32xf32>
    %16 = math.exp %15 : vector<1x32xf32>
    %cst_11 = arith.constant 1.000000e+00 : f32
    %17 = vector.broadcast %cst_11 : f32 to vector<1x32xf32>
    %18 = arith.addf %17, %16 : vector<1x32xf32>
    %19 = arith.divf %17, %18 : vector<1x32xf32>
    %20 = vector.shape_cast %19 : vector<1x32xf32> to vector<1x32x1xf32>
    %21 = vector.broadcast %20 : vector<1x32x1xf32> to vector<1x32x256xf32>
    %22 = arith.mulf %0, %21 : vector<1x32x256xf32>
    %cst_12 = arith.constant dense<0.000000e+00> : vector<1x256xf32>
    %23 = vector.multi_reduction <add>, %22, %cst_12 [1] : vector<1x32x256xf32> to vector<1x256xf32>
    %cst_13 = arith.constant 3.200000e+01 : f32
    %24 = vector.broadcast %cst_13 : f32 to vector<1x256xf32>
    %25 = arith.divf %23, %24 : vector<1x256xf32>
    %cst_14 = arith.constant dense<0xFF800000> : vector<1x256xf32>
    %26 = vector.multi_reduction <maximumf>, %22, %cst_14 [1] : vector<1x32x256xf32> to vector<1x256xf32>
    %27 = tpu.concatenate %25, %26 in 1 : vector<1x256xf32>, vector<1x256xf32> -> vector<1x512xf32>
    %c0_15 = arith.constant 0 : index
    %c0_16 = arith.constant 0 : index
    %28 = vector.load %arg4[%c0_15, %c0_16] : memref<512x256xf32, #tpu.memory_space<vmem>>, vector<512x256xf32>
    %cst_17 = arith.constant dense<0.000000e+00> : vector<1x256xf32>
    %29 = tpu.matmul %27, %28, %cst_17 {dimension_numbers = #tpu.dot_dimension_numbers<[1], [0], [0], [1], [0, 0, 1, 1], [], []>} : vector<1x512xf32>, vector<512x256xf32>, vector<1x256xf32> -> vector<1x256xf32>
    %30 = arith.negf %29 : vector<1x256xf32>
    %31 = math.exp %30 : vector<1x256xf32>
    %cst_18 = arith.constant 1.000000e+00 : f32
    %32 = vector.broadcast %cst_18 : f32 to vector<1x256xf32>
    %33 = arith.addf %32, %31 : vector<1x256xf32>
    %34 = arith.divf %32, %33 : vector<1x256xf32>
    %35 = vector.shape_cast %34 : vector<1x256xf32> to vector<1x1x256xf32>
    %36 = vector.broadcast %35 : vector<1x1x256xf32> to vector<1x32x256xf32>
    %37 = arith.mulf %22, %36 : vector<1x32x256xf32>
    %c0_19 = arith.constant 0 : index
    %c0_20 = arith.constant 0 : index
    %c0_21 = arith.constant 0 : index
    %38 = vector.load %arg5[%c0_19, %c0_20, %c0_21] : memref<1x32x256xf32, #tpu.memory_space<vmem>>, vector<1x32x256xf32>
    tpu.vector_store %arg5[%c0_19, %c0_20, %c0_21], %37 {strides = array<i32>} : memref<1x32x256xf32, #tpu.memory_space<vmem>>, vector<1x32x256xf32>,
    return
  }
  func.func @transform_0(%arg0: i32) -> (i32, i32, i32) {
    %c0_i32 = arith.constant 0 : i32
    %c0_i32_0 = arith.constant 0 : i32
    %c0_i32_1 = arith.constant 0 : i32
    return %arg0, %c0_i32, %c0_i32_0 : i32, i32, i32
  }
  func.func @transform_1(%arg0: i32) -> (i32, i32) {
    %c0_i32 = arith.constant 0 : i32
    %c0_i32_0 = arith.constant 0 : i32
    %c0_i32_1 = arith.constant 0 : i32
    return %c0_i32, %c0_i32_0 : i32, i32
  }
  func.func @transform_2(%arg0: i32) -> (i32, i32) {
    %c0_i32 = arith.constant 0 : i32
    %c0_i32_0 = arith.constant 0 : i32
    %c0_i32_1 = arith.constant 0 : i32
    return %c0_i32, %c0_i32_0 : i32, i32
  }
  func.func @transform_3(%arg0: i32) -> (i32, i32) {
    %c0_i32 = arith.constant 0 : i32
    %c0_i32_0 = arith.constant 0 : i32
    %c0_i32_1 = arith.constant 0 : i32
    return %c0_i32, %c0_i32_0 : i32, i32
  }
  func.func @transform_4(%arg0: i32) -> (i32, i32, i32) {
    %c0_i32 = arith.constant 0 : i32
    %c0_i32_0 = arith.constant 0 : i32
    %c0_i32_1 = arith.constant 0 : i32
    return %arg0, %c0_i32, %c0_i32_0 : i32, i32, i32
  }
}

</mosaic_0001>

<llo_original>
// kernel: cbam_forward.1
$region0: #{cbam_forward.1}
  #allocation0 [shape = 'u32[]', space=smem, size = 0x4, offset = 0x4, fixed_abs, tag = 'smem constant byte address 0x4 - core index']
  #allocation1 [shape = 'u32[72,128]{1,0:T(1,128)}', space=vmem, size = 0x9000, scoped, tag = 'internal scratch']
  %s0 = inlined_call_operand.vmem [shape: f32[2,32,256], index: 0, kind: input, shape index: {}]
  %s1 = inlined_call_operand.vmem [shape: f32[32,2], index: 1, kind: input, shape index: {}]
  %s2 = inlined_call_operand.vmem [shape: f32[2,32], index: 2, kind: input, shape index: {}]
  %s3 = inlined_call_operand.vmem [shape: f32[512,256], index: 3, kind: input, shape index: {}]
  %s4 = inlined_call_operand.vmem [shape: f32[2,32,256], index: 4, kind: output, shape index: {}]
  %s5 = sld [smem:[#allocation0]]
  $region49: #{cbam_forward.1} parent=0
    _
  %s7 = ssub.s32 1, %s5
  %s8 = scalar_select 0, %s7, %s5
  loop: start=0, step=1, limit=4
  $region2: #{cbam_forward.1} parent=0 // loop_pre_header
    _
  $region3: #{cbam_forward.1} parent=0 // loop_header
    %s10 = sphi 0, %s14
    %p11 = scmp.ge.s32.totalorder %s10, 4
    %s20 = sphi 0, %s22
    %s23 = sphi 0, %s20
    %s24 = sphi 0, %s23
    %s40 = sphi 0, %s24
    %s44 = sphi 0, %s44
    %s46 = sphi 0, %s44
    %s47 = sphi 0, %s46
    %s61 = sphi 0, %s47
    %s65 = sphi 0, %s65
    %s67 = sphi 0, %s65
    %s68 = sphi 0, %s67
    %s82 = sphi 0, %s68
    %s86 = sphi 0, %s86
    %s88 = sphi 0, %s86
    %s89 = sphi 0, %s88
    %s103 = sphi 0, %s89
    %s109 = sphi 0, %s111
    %s112 = sphi 0, %s109
    %s113 = sphi 0, %s112
    %s129 = sphi 0, %s113
  $region4: #{cbam_forward.1} parent=0 // loop_header_branch
    %13 = sbr.rel (%p11) target = $region8
  $region5: #{cbam_forward.1} parent=0 // loop_body
    %s15 = ssub.s32 %s10, 1
    %s16 = ssub.s32 %s10, 2
    %s17 = sadd.s32 %s10, 1
    %s18 = ssub.s32 %s10, %s17
    %p19 = scmp.eq.s32.totalorder %s18, 0
    %s21 = sadd.s32 %s20, 1
    %s22 = scalar_select %p19, %s20, %s21
    %p25 = pneg %p19
    %p26 = scmp.eq.s32.totalorder %s10, 1
    %p27 = por %p25, %p26
    %p28 = scmp.ne.s32.totalorder %s20, %s23
    %p29 = scmp.eq.s32.totalorder %s10, 0
    %p30 = por %p28, %p29
    %p31 = scmp.ne.s32.totalorder %s20, %s23
    %p32 = scmp.eq.s32.totalorder %s15, 1
    %p33 = por %p31, %p32
    %p34 = scmp.ne.s32.totalorder %s23, %s24
    %p35 = scmp.eq.s32.totalorder %s15, 0
    %p36 = por %p34, %p35
    %p37 = scmp.ne.s32.totalorder %s23, %s24
    %p38 = scmp.eq.s32.totalorder %s16, 1
    %p39 = por %p37, %p38
    %p41 = scmp.ne.s32.totalorder %s24, %s40
    %p42 = scmp.eq.s32.totalorder %s16, 0
    %p43 = por %p41, %p42
    %s45 = sadd.s32 %s44, 1
    %p48 = scmp.eq.s32.totalorder %s10, 1
    %p49 = scmp.ne.s32.totalorder %s44, %s46
    %p50 = scmp.eq.s32.totalorder %s10, 0
    %p51 = por %p49, %p50
    %p52 = scmp.ne.s32.totalorder %s44, %s46
    %p53 = scmp.eq.s32.totalorder %s15, 1
    %p54 = por %p52, %p53
    %p55 = scmp.ne.s32.totalorder %s46, %s47
    %p56 = scmp.eq.s32.totalorder %s15, 0
    %p57 = por %p55, %p56
    %p58 = scmp.ne.s32.totalorder %s46, %s47
    %p59 = scmp.eq.s32.totalorder %s16, 1
    %p60 = por %p58, %p59
    %p62 = scmp.ne.s32.totalorder %s47, %s61
    %p63 = scmp.eq.s32.totalorder %s16, 0
    %p64 = por %p62, %p63
    %s66 = sadd.s32 %s65, 1
    %p69 = scmp.eq.s32.totalorder %s10, 1
    %p70 = scmp.ne.s32.totalorder %s65, %s67
    %p71 = scmp.eq.s32.totalorder %s10, 0
    %p72 = por %p70, %p71
    %p73 = scmp.ne.s32.totalorder %s65, %s67
    %p74 = scmp.eq.s32.totalorder %s15, 1
    %p75 = por %p73, %p74
    %p76 = scmp.ne.s32.totalorder %s67, %s68
    %p77 = scmp.eq.s32.totalorder %s15, 0
    %p78 = por %p76, %p77
    %p79 = scmp.ne.s32.totalorder %s67, %s68
    %p80 = scmp.eq.s32.totalorder %s16, 1
    %p81 = por %p79, %p80
    %p83 = scmp.ne.s32.totalorder %s68, %s82
    %p84 = scmp.eq.s32.totalorder %s16, 0
    %p85 = por %p83, %p84
    %s87 = sadd.s32 %s86, 1
    %p90 = scmp.eq.s32.totalorder %s10, 1
    %p91 = scmp.ne.s32.totalorder %s86, %s88
    %p92 = scmp.eq.s32.totalorder %s10, 0
    %p93 = por %p91, %p92
    %p94 = scmp.ne.s32.totalorder %s86, %s88
    %p95 = scmp.eq.s32.totalorder %s15, 1
    %p96 = por %p94, %p95
    %p97 = scmp.ne.s32.totalorder %s88, %s89
    %p98 = scmp.eq.s32.totalorder %s15, 0
    %p99 = por %p97, %p98
    %p100 = scmp.ne.s32.totalorder %s88, %s89
    %p101 = scmp.eq.s32.totalorder %s16, 1
    %p102 = por %p100, %p101
    %p104 = scmp.ne.s32.totalorder %s89, %s103
    %p105 = scmp.eq.s32.totalorder %s16, 0
    %p106 = por %p104, %p105
    %s107 = ssub.s32 %s10, %s17
    %p108 = scmp.eq.s32.totalorder %s107, 0
    %s110 = sadd.s32 %s109, 1
    %s111 = scalar_select %p108, %s109, %s110
    %p114 = pneg %p108
    %p115 = scmp.eq.s32.totalorder %s10, 1
    %p116 = por %p114, %p115
    %p117 = scmp.ne.s32.totalorder %s109, %s112
    %p118 = scmp.eq.s32.totalorder %s10, 0
    %p119 = por %p117, %p118
    %p120 = scmp.ne.s32.totalorder %s109, %s112
    %p121 = scmp.eq.s32.totalorder %s15, 1
    %p122 = por %p120, %p121
    %p123 = scmp.ne.s32.totalorder %s112, %s113
    %p124 = scmp.eq.s32.totalorder %s15, 0
    %p125 = por %p123, %p124
    %p126 = scmp.ne.s32.totalorder %s112, %s113
    %p127 = scmp.eq.s32.totalorder %s16, 1
    %p128 = por %p126, %p127
    %p130 = scmp.ne.s32.totalorder %s113, %s129
    %p131 = scmp.eq.s32.totalorder %s16, 0
    %p132 = por %p130, %p131
    %p133 = scmp.le.s32.totalorder 1, %s10
    %p134 = scmp.lt.s32.totalorder %s10, 3
    %p135 = pnand %p133, %p134
    %p136 = pneg %p135
    // Predicated region
    $region9: #{cbam_forward.1} parent=5 // pred_check
      _
    $region10: #{cbam_forward.1} parent=5 // pred_check_branch
      %138 = sbr.rel (%p135) target = $region12
    $region11: #{cbam_forward.1} parent=5 // pred_region
      %s139 = ssub.s32 %s10, 1
      // Predicated region
      $region13: #{cbam_forward.1} parent=11 // pred_check
        %p140 = pneg %p57
      $region14: #{cbam_forward.1} parent=11 // pred_check_branch
        %142 = sbr.rel (%p140) target = $region16
      $region15: #{cbam_forward.1} parent=11 // pred_region
        _
      $region16: #{cbam_forward.1} parent=11 // pred_fallthru
        _
      // Predicated region
      $region17: #{cbam_forward.1} parent=11 // pred_check
        %p143 = pneg %p78
      $region18: #{cbam_forward.1} parent=11 // pred_check_branch
        %145 = sbr.rel (%p143) target = $region20
      $region19: #{cbam_forward.1} parent=11 // pred_region
        _
      $region20: #{cbam_forward.1} parent=11 // pred_fallthru
        _
      // Predicated region
      $region21: #{cbam_forward.1} parent=11 // pred_check
        %p146 = pneg %p99
      $region22: #{cbam_forward.1} parent=11 // pred_check_branch
        %148 = sbr.rel (%p146) target = $region24
      $region23: #{cbam_forward.1} parent=11 // pred_region
        _
      $region24: #{cbam_forward.1} parent=11 // pred_fallthru
        _
    $region12: #{cbam_forward.1} parent=5 // pred_fallthru
      _
    %p149 = scmp.lt.s32.totalorder %s10, 2
    // Predicated region
    $region25: #{cbam_forward.1} parent=5 // pred_check
      %p150 = pneg %p149
    $region26: #{cbam_forward.1} parent=5 // pred_check_branch
      %152 = sbr.rel (%p150) target = $region28
    $region27: #{cbam_forward.1} parent=5 // pred_region
      // Predicated region
      $region29: #{cbam_forward.1} parent=27 // pred_check
        %p153 = pneg %p30
      $region30: #{cbam_forward.1} parent=27 // pred_check_branch
        %155 = sbr.rel (%p153) target = $region32
      $region31: #{cbam_forward.1} parent=27 // pred_region
        %p156 = scmp.lt.s32.totalorder %s10, 1
        %s157 = scalar_select %p156, %s10, 1
        %s158 = smul.addr %s157, 8
        %s159 = smul.addr %s158, 8
        %s160 = scalar_lea.vmem %s0, %s159
      $region32: #{cbam_forward.1} parent=27 // pred_fallthru
        _
    $region28: #{cbam_forward.1} parent=5 // pred_fallthru
      _
    %p161 = scmp.le.s32.totalorder 1, %s10
    %p162 = scmp.lt.s32.totalorder %s10, 3
    %p163 = pnand %p161, %p162
    %p164 = pneg %p163
    // Predicated region
    $region33: #{cbam_forward.1} parent=5 // pred_check
      _
    $region34: #{cbam_forward.1} parent=5 // pred_check_branch
      %166 = sbr.rel (%p163) target = $region36
    $region35: #{cbam_forward.1} parent=5 // pred_region
      %s167 = ssub.s32 %s10, 1
      %p168 = scmp.lt.s32.totalorder %s15, 1
      %s169 = scalar_select %p168, %s15, 1
      %s170 = smul.addr %s169, 8
      %s171 = smul.addr %s170, 8
      %s172 = scalar_lea.vmem %s0, %s171
      %p173 = pneg %p36
      %p174 = pneg %p33
      %p175 = pneg %p57
      %p176 = pneg %p54
      %p177 = pneg %p78
      %p178 = pneg %p75
      %p179 = pneg %p99
      %p180 = pneg %p96
      %p181 = pneg %p125
      %p182 = pneg %p122
      %p183 = scmp.lt.s32.totalorder %s15, 1
      %s184 = scalar_select %p183, %s15, 1
      %s185 = smul.addr %s184, 8
      %s186 = smul.addr %s185, 8
      %s187 = scalar_lea.vmem %s4, %s186
      %p188 = scmp.lt.s32.totalorder %s15, 1
      %s189 = scalar_select %p188, %s15, 1
      %s190 = smul.addr %s189, 8
      %s191 = smul.addr %s190, 8
      %s192 = scalar_lea.vmem %s0, %s191
      %p193 = scmp.lt.s32.totalorder %s15, 1
      %s194 = scalar_select %p193, %s15, 1
      %s195 = smul.addr %s194, 8
      %s196 = smul.addr %s195, 8
      %s197 = scalar_lea.vmem %s4, %s196
      %v198 = vld [vmem:[%s192] sm:$0xff]
      %v199 = vld [vmem:[%s192 + $0x8] sm:$0xff]
      %v200 = vld [vmem:[%s192 + $0x10] sm:$0xff]
      %v201 = vld [vmem:[%s192 + $0x18] sm:$0xff]
      %v202 = vld [vmem:[%s192 + $0x20] sm:$0xff]
      %v203 = vld [vmem:[%s192 + $0x28] sm:$0xff]
      %v204 = vld [vmem:[%s192 + $0x30] sm:$0xff]
      %v205 = vld [vmem:[%s192 + $0x38] sm:$0xff]
      %v206 = vadd.f32 %v198, %v199
      %207 = vadd.xlane.f32.xlu0 %v206
      %v208 = vpop.xlane.xlu0 %207
      %v209 = vadd.f32 %v200, %v201
      %210 = vadd.xlane.f32.xlu0 %v209
      %v211 = vpop.xlane.xlu0 %210
      %v212 = vadd.f32 %v202, %v203
      %213 = vadd.xlane.f32.xlu0 %v212
      %v214 = vpop.xlane.xlu0 %213
      %v215 = vadd.f32 %v204, %v205
      %216 = vadd.xlane.f32.xlu0 %v215
      %v217 = vpop.xlane.xlu0 %216
      %v218 = vrcp.pop 256.0
      %v219 = vmul.f32 256.0, %v218
      %v220 = vsub.f32 1.0, %v219
      %v221 = vmul.f32 %v218, %v220
      %v222 = vadd.f32 %v218, %v221
      %vm223 = vweird.f32 %v218
      %v224 = vsel %vm223, %v218, %v222
      %v225 = vmul.f32 %v208, %v224
      %v226 = vmul.f32 %v211, %v224
      %v227 = vmul.f32 %v214, %v224
      %v228 = vmul.f32 %v217, %v224
      %v229 = vmax.f32 %v198, %v199
      %230 = vmax.xlane.f32.xlu0 %v229
      %v231 = vpop.xlane.xlu0 %230
      %v232 = vmax.f32 %v200, %v201
      %233 = vmax.xlane.f32.xlu0 %v232
      %v234 = vpop.xlane.xlu0 %233
      %v235 = vmax.f32 %v202, %v203
      %236 = vmax.xlane.f32.xlu0 %v235
      %v237 = vpop.xlane.xlu0 %236
      %v238 = vmax.f32 %v204, %v205
      %239 = vmax.xlane.f32.xlu0 %v238
      %v240 = vpop.xlane.xlu0 %239
      %v245 = vlaneseq
      %v246 = vand.u32 %v245, 127
      %v247 = vperm.slane %v225, %v246
      %v248 = vadd.s32 %v246, 4294967288
      %v249 = vperm.slane %v226, %v248
      %vm250 = vcmask 130112
      %v251 = vsel %vm250, %v249, %v247
      %v252 = vadd.s32 %v246, 4294967280
      %v253 = vperm.slane %v227, %v252
      %vm254 = vcmask 195712
      %v255 = vsel %vm254, %v253, %v251
      %v256 = vadd.s32 %v246, 4294967272
      %v257 = vperm.slane %v228, %v256
      %vm258 = vcmask 261312
      %v259 = vsel %vm258, %v257, %v255
      %v265 = vperm.slane %v231, %v246
      %v266 = vperm.slane %v234, %v248
      %v267 = vsel %vm250, %v266, %v265
      %v268 = vperm.slane %v237, %v252
      %v269 = vsel %vm254, %v268, %v267
      %v270 = vperm.slane %v240, %v256
      %v271 = vsel %vm258, %v270, %v269
      %vm273 = vcmask 1040384
      %v274 = vsel %vm273, %v259, %v271
      %v275 = vld [vmem:[%s1] sm:$0xff]
      %v276 = vld [vmem:[%s1 + $0x8] sm:$0xff]
      %v277 = vld [vmem:[%s1 + $0x10] sm:$0xff]
      %v278 = vld [vmem:[%s1 + $0x18] sm:$0xff]
      %vm279 = vcmask 261120
      %v281 = vsel %vm279, %v274, 0
      %283 = vmatpush.msra.mxu0 0.0
      %284 = vmatpush.msra.mxu0 0.0
      %285 = vmatpush.msra.mxu0 0.0
      %286 = vmatpush.msra.mxu0 0.0
      %287 = vmatpush.msra.mxu0 0.0
      %288 = vmatpush.msra.mxu0 0.0
      %289 = vmatpush.msra.mxu0 0.0
      %290 = vmatpush.msra.mxu0 0.0
      %291 = vmatpush.msra.mxu0 0.0
      %292 = vmatpush.msra.mxu0 0.0
      %293 = vmatpush.msra.mxu0 0.0
      %294 = vmatpush.msra.mxu0 0.0
      %295 = vmatpush.msra.mxu0 %v278
      %296 = vmatpush.msra.mxu0 %v277
      %297 = vmatpush.msra.mxu0 %v276
      %298 = vmatpush.msra.mxu0 %v275
      %299 = vmatmul.f32.gmra.mxu0 %v281
      %v300 = vpop.f32.mrf.mxu0
      %v301 = vadd.f32 0.0, %v300
      %302 = vdwg.mxu0
      %v303 = vmax.f32 %v301, 0.0
      %v304 = vld [vmem:[%s2] sm:$0x3]
      %vm305 = vcmask 15360
      %v307 = vsel %vm305, %v303, 0
      %vm309 = vcmask 1041408
      %v311 = vsel %vm309, %v304, 0
      %313 = vmatpush.msra.mxu0 0.0
      %314 = vmatpush.msra.mxu0 0.0
      %315 = vmatpush.msra.mxu0 0.0
      %316 = vmatpush.msra.mxu0 0.0
      %317 = vmatpush.msra.mxu0 0.0
      %318 = vmatpush.msra.mxu0 0.0
      %319 = vmatpush.msra.mxu0 0.0
      %320 = vmatpush.msra.mxu0 0.0
      %321 = vmatpush.msra.mxu0 0.0
      %322 = vmatpush.msra.mxu0 0.0
      %323 = vmatpush.msra.mxu0 0.0
      %324 = vmatpush.msra.mxu0 0.0
      %325 = vmatpush.msra.mxu0 0.0
      %326 = vmatpush.msra.mxu0 0.0
      %327 = vmatpush.msra.mxu0 0.0
      %328 = vmatpush.msra.mxu0 %v311
      %329 = vmatmul.f32.gmra.mxu0 %v307
      %v330 = vpop.f32.mrf.mxu0
      %v331 = vadd.f32 0.0, %v330
      %332 = vdwg.mxu0
      %v334 = vrot.slane %v331, 1
      %v336 = vadd.f32 %v331, %v334
      %v337 = vxor.u32 %v336, 2147483648
      %v338 = vmul.f32 %v337, 1.442695
      %v339 = vpow.pop %v338
      %v340 = vadd.f32 %v339, 1.0
      %v341 = vrcp.pop %v340
      %v342 = vmul.f32 %v340, %v341
      %v343 = vsub.f32 1.0, %v342
      %v344 = vmul.f32 %v341, %v343
      %v345 = vadd.f32 %v341, %v344
      %vm346 = vweird.f32 %v340
      %vm347 = vweird.f32 %v341
      %vm348 = vmor %vm346, %vm347
      %v349 = vsel %vm348, %v341, %v345
      %v350 = vand.u32 2147483647, %v340
      %vm351 = vcmp.eq.f32.partialorder %v350, 8.507059e+37
      %v352 = vand.u32 %v340, 2147483648
      %v353 = vor.u32 1.1754944e-38, %v352
      %v354 = vsel %vm351, %v353, %v349
      %v355 = vmul.f32 1.0, %v354
      %v356 = vperm.slane %v355, 0
      %v357 = vlaneseq
      %v358 = vshrl.u32 %v357, 7
      %360 = vset.pattern.permute.xlu0 %v358
      %361 = vperm.xlu0 %360, %v356
      %v362 = vpop.permute.xlu0 %361
      %v363 = vlaneseq
      %v364 = vshrl.u32 %v363, 7
      %v365 = vadd.s32 %v364, 8
      %366 = vset.pattern.permute.xlu0 %v365
      %367 = vperm.xlu0 %366, %v356
      %v368 = vpop.permute.xlu0 %367
      %v369 = vlaneseq
      %v370 = vshrl.u32 %v369, 7
      %v371 = vadd.s32 %v370, 16
      %372 = vset.pattern.permute.xlu0 %v371
      %373 = vperm.xlu0 %372, %v356
      %v374 = vpop.permute.xlu0 %373
      %v375 = vlaneseq
      %v376 = vshrl.u32 %v375, 7
      %v377 = vadd.s32 %v376, 24
      %378 = vset.pattern.permute.xlu0 %v377
      %379 = vperm.xlu0 %378, %v356
      %v380 = vpop.permute.xlu0 %379
      %v381 = vmul.f32 %v198, %v362
      %v382 = vmul.f32 %v199, %v362
      %v383 = vmul.f32 %v200, %v368
      %v384 = vmul.f32 %v201, %v368
      %v385 = vmul.f32 %v202, %v374
      %v386 = vmul.f32 %v203, %v374
      %v387 = vmul.f32 %v204, %v380
      %v388 = vmul.f32 %v205, %v380
      %v389 = vadd.f32 %v381, %v383
      %v390 = vadd.f32 %v389, %v385
      %v391 = vadd.f32 %v390, %v387
      %v392 = vrot.slane %v391, 4
      %v393 = vadd.f32 %v391, %v392
      %v394 = vrot.slane %v393, 2
      %v395 = vadd.f32 %v393, %v394
      %v396 = vrot.slane %v395, 1
      %v397 = vadd.f32 %v395, %v396
      %v398 = vadd.f32 %v382, %v384
      %v399 = vadd.f32 %v398, %v386
      %v400 = vadd.f32 %v399, %v388
      %v401 = vrot.slane %v400, 4
      %v402 = vadd.f32 %v400, %v401
      %v403 = vrot.slane %v402, 2
      %v404 = vadd.f32 %v402, %v403
      %v405 = vrot.slane %v404, 1
      %v406 = vadd.f32 %v404, %v405
      %v407 = vrcp.pop 32.0
      %v408 = vmul.f32 32.0, %v407
      %v409 = vsub.f32 1.0, %v408
      %v410 = vmul.f32 %v407, %v409
      %v411 = vadd.f32 %v407, %v410
      %vm412 = vweird.f32 %v407
      %v413 = vsel %vm412, %v407, %v411
      %v414 = vmul.f32 %v397, %v413
      %v415 = vmul.f32 %v406, %v413
      %v416 = vmax.f32 %v381, %v385
      %v417 = vmax.f32 %v383, %v387
      %v418 = vmax.f32 %v416, %v417
      %v419 = vrot.slane %v418, 4
      %v420 = vmax.f32 %v418, %v419
      %v421 = vrot.slane %v420, 2
      %v422 = vmax.f32 %v420, %v421
      %v423 = vrot.slane %v422, 1
      %v424 = vmax.f32 %v422, %v423
      %v425 = vmax.f32 %v382, %v386
      %v426 = vmax.f32 %v384, %v388
      %v427 = vmax.f32 %v425, %v426
      %v428 = vrot.slane %v427, 4
      %v429 = vmax.f32 %v427, %v428
      %v430 = vrot.slane %v429, 2
      %v431 = vmax.f32 %v429, %v430
      %v432 = vrot.slane %v431, 1
      %v433 = vmax.f32 %v431, %v432
      %v434 = vld [vmem:[%s3] sm:$0xff]
      %v435 = vld [vmem:[%s3 + $0x8] sm:$0xff]
      %v436 = vld [vmem:[%s3 + $0x10] sm:$0xff]
      %v437 = vld [vmem:[%s3 + $0x18] sm:$0xff]
      %v438 = vld [vmem:[%s3 + $0x20] sm:$0xff]
      %v439 = vld [vmem:[%s3 + $0x28] sm:$0xff]
      %v440 = vld [vmem:[%s3 + $0x30] sm:$0xff]
      %v441 = vld [vmem:[%s3 + $0x38] sm:$0xff]
      %v442 = vld [vmem:[%s3 + $0x40] sm:$0xff]
      %v443 = vld [vmem:[%s3 + $0x48] sm:$0xff]
      %v444 = vld [vmem:[%s3 + $0x50] sm:$0xff]
      %v445 = vld [vmem:[%s3 + $0x58] sm:$0xff]
      %v446 = vld [vmem:[%s3 + $0x60] sm:$0xff]
      %v447 = vld [vmem:[%s3 + $0x68] sm:$0xff]
      %v448 = vld [vmem:[%s3 + $0x70] sm:$0xff]
      %v449 = vld [vmem:[%s3 + $0x78] sm:$0xff]
      %v450 = vld [vmem:[%s3 + $0x80] sm:$0xff]
      %v451 = vld [vmem:[%s3 + $0x88] sm:$0xff]
      %v452 = vld [vmem:[%s3 + $0x90] sm:$0xff]
      %v453 = vld [vmem:[%s3 + $0x98] sm:$0xff]
      %v454 = vld [vmem:[%s3 + $0xa0] sm:$0xff]
      %v455 = vld [vmem:[%s3 + $0xa8] sm:$0xff]
      %v456 = vld [vmem:[%s3 + $0xb0] sm:$0xff]
      %v457 = vld [vmem:[%s3 + $0xb8] sm:$0xff]
      %v458 = vld [vmem:[%s3 + $0xc0] sm:$0xff]
      %v459 = vld [vmem:[%s3 + $0xc8] sm:$0xff]
      %v460 = vld [vmem:[%s3 + $0xd0] sm:$0xff]
      %v461 = vld [vmem:[%s3 + $0xd8] sm:$0xff]
      %v462 = vld [vmem:[%s3 + $0xe0] sm:$0xff]
      %v463 = vld [vmem:[%s3 + $0xe8] sm:$0xff]
      %v464 = vld [vmem:[%s3 + $0xf0] sm:$0xff]
      %v465 = vld [vmem:[%s3 + $0xf8] sm:$0xff]
      %v466 = vld [vmem:[%s3 + $0x100] sm:$0xff]
      %v467 = vld [vmem:[%s3 + $0x108] sm:$0xff]
      %v468 = vld [vmem:[%s3 + $0x110] sm:$0xff]
      %v469 = vld [vmem:[%s3 + $0x118] sm:$0xff]
      %v470 = vld [vmem:[%s3 + $0x120] sm:$0xff]
      %v471 = vld [vmem:[%s3 + $0x128] sm:$0xff]
      %v472 = vld [vmem:[%s3 + $0x130] sm:$0xff]
      %v473 = vld [vmem:[%s3 + $0x138] sm:$0xff]
      %v474 = vld [vmem:[%s3 + $0x140] sm:$0xff]
      %v475 = vld [vmem:[%s3 + $0x148] sm:$0xff]
      %v476 = vld [vmem:[%s3 + $0x150] sm:$0xff]
      %v477 = vld [vmem:[%s3 + $0x158] sm:$0xff]
      %v478 = vld [vmem:[%s3 + $0x160] sm:$0xff]
      %v479 = vld [vmem:[%s3 + $0x168] sm:$0xff]
      %v480 = vld [vmem:[%s3 + $0x170] sm:$0xff]
      %v481 = vld [vmem:[%s3 + $0x178] sm:$0xff]
      %v482 = vld [vmem:[%s3 + $0x180] sm:$0xff]
      %v483 = vld [vmem:[%s3 + $0x188] sm:$0xff]
      %v484 = vld [vmem:[%s3 + $0x190] sm:$0xff]
      %v485 = vld [vmem:[%s3 + $0x198] sm:$0xff]
      %v486 = vld [vmem:[%s3 + $0x1a0] sm:$0xff]
      %v487 = vld [vmem:[%s3 + $0x1a8] sm:$0xff]
      %v488 = vld [vmem:[%s3 + $0x1b0] sm:$0xff]
      %v489 = vld [vmem:[%s3 + $0x1b8] sm:$0xff]
      %v490 = vld [vmem:[%s3 + $0x1c0] sm:$0xff]
      %v491 = vld [vmem:[%s3 + $0x1c8] sm:$0xff]
      %v492 = vld [vmem:[%s3 + $0x1d0] sm:$0xff]
      %v493 = vld [vmem:[%s3 + $0x1d8] sm:$0xff]
      %v494 = vld [vmem:[%s3 + $0x1e0] sm:$0xff]
      %v495 = vld [vmem:[%s3 + $0x1e8] sm:$0xff]
      %v496 = vld [vmem:[%s3 + $0x1f0] sm:$0xff]
      %v497 = vld [vmem:[%s3 + $0x1f8] sm:$0xff]
      %v498 = vld [vmem:[%s3 + $0x200] sm:$0xff]
      %v499 = vld [vmem:[%s3 + $0x208] sm:$0xff]
      %v500 = vld [vmem:[%s3 + $0x210] sm:$0xff]
      %v501 = vld [vmem:[%s3 + $0x218] sm:$0xff]
      %v502 = vld [vmem:[%s3 + $0x220] sm:$0xff]
      %v503 = vld [vmem:[%s3 + $0x228] sm:$0xff]
      %v504 = vld [vmem:[%s3 + $0x230] sm:$0xff]
      %v505 = vld [vmem:[%s3 + $0x238] sm:$0xff]
      %v506 = vld [vmem:[%s3 + $0x240] sm:$0xff]
      %v507 = vld [vmem:[%s3 + $0x248] sm:$0xff]
      %v508 = vld [vmem:[%s3 + $0x250] sm:$0xff]
      %v509 = vld [vmem:[%s3 + $0x258] sm:$0xff]
      %v510 = vld [vmem:[%s3 + $0x260] sm:$0xff]
      %v511 = vld [vmem:[%s3 + $0x268] sm:$0xff]
      %v512 = vld [vmem:[%s3 + $0x270] sm:$0xff]
      %v513 = vld [vmem:[%s3 + $0x278] sm:$0xff]
      %v514 = vld [vmem:[%s3 + $0x280] sm:$0xff]
      %v515 = vld [vmem:[%s3 + $0x288] sm:$0xff]
      %v516 = vld [vmem:[%s3 + $0x290] sm:$0xff]
      %v517 = vld [vmem:[%s3 + $0x298] sm:$0xff]
      %v518 = vld [vmem:[%s3 + $0x2a0] sm:$0xff]
      %v519 = vld [vmem:[%s3 + $0x2a8] sm:$0xff]
      %v520 = vld [vmem:[%s3 + $0x2b0] sm:$0xff]
      %v521 = vld [vmem:[%s3 + $0x2b8] sm:$0xff]
      %v522 = vld [vmem:[%s3 + $0x2c0] sm:$0xff]
      %v523 = vld [vmem:[%s3 + $0x2c8] sm:$0xff]
      %v524 = vld [vmem:[%s3 + $0x2d0] sm:$0xff]
      %v525 = vld [vmem:[%s3 + $0x2d8] sm:$0xff]
      %v526 = vld [vmem:[%s3 + $0x2e0] sm:$0xff]
      %v527 = vld [vmem:[%s3 + $0x2e8] sm:$0xff]
      %v528 = vld [vmem:[%s3 + $0x2f0] sm:$0xff]
      %v529 = vld [vmem:[%s3 + $0x2f8] sm:$0xff]
      %v530 = vld [vmem:[%s3 + $0x300] sm:$0xff]
      %v531 = vld [vmem:[%s3 + $0x308] sm:$0xff]
      %v532 = vld [vmem:[%s3 + $0x310] sm:$0xff]
      %v533 = vld [vmem:[%s3 + $0x318] sm:$0xff]
      %v534 = vld [vmem:[%s3 + $0x320] sm:$0xff]
      %v535 = vld [vmem:[%s3 + $0x328] sm:$0xff]
      %v536 = vld [vmem:[%s3 + $0x330] sm:$0xff]
      %v537 = vld [vmem:[%s3 + $0x338] sm:$0xff]
      %v538 = vld [vmem:[%s3 + $0x340] sm:$0xff]
      %v539 = vld [vmem:[%s3 + $0x348] sm:$0xff]
      %v540 = vld [vmem:[%s3 + $0x350] sm:$0xff]
      %v541 = vld [vmem:[%s3 + $0x358] sm:$0xff]
      %v542 = vld [vmem:[%s3 + $0x360] sm:$0xff]
      %v543 = vld [vmem:[%s3 + $0x368] sm:$0xff]
      %v544 = vld [vmem:[%s3 + $0x370] sm:$0xff]
      %v545 = vld [vmem:[%s3 + $0x378] sm:$0xff]
      %v546 = vld [vmem:[%s3 + $0x380] sm:$0xff]
      %v547 = vld [vmem:[%s3 + $0x388] sm:$0xff]
      %v548 = vld [vmem:[%s3 + $0x390] sm:$0xff]
      %v549 = vld [vmem:[%s3 + $0x398] sm:$0xff]
      %v550 = vld [vmem:[%s3 + $0x3a0] sm:$0xff]
      %v551 = vld [vmem:[%s3 + $0x3a8] sm:$0xff]
      %v552 = vld [vmem:[%s3 + $0x3b0] sm:$0xff]
      %v553 = vld [vmem:[%s3 + $0x3b8] sm:$0xff]
      %v554 = vld [vmem:[%s3 + $0x3c0] sm:$0xff]
      %v555 = vld [vmem:[%s3 + $0x3c8] sm:$0xff]
      %v556 = vld [vmem:[%s3 + $0x3d0] sm:$0xff]
      %v557 = vld [vmem:[%s3 + $0x3d8] sm:$0xff]
      %v558 = vld [vmem:[%s3 + $0x3e0] sm:$0xff]
      %v559 = vld [vmem:[%s3 + $0x3e8] sm:$0xff]
      %v560 = vld [vmem:[%s3 + $0x3f0] sm:$0xff]
      %v561 = vld [vmem:[%s3 + $0x3f8] sm:$0xff]
      %562 = vmatpush.msra.mxu0 %v464
      %563 = vmatpush.msra.mxu0 %v462
      %564 = vmatpush.msra.mxu0 %v460
      %565 = vmatpush.msra.mxu0 %v458
      %566 = vmatpush.msra.mxu0 %v456
      %567 = vmatpush.msra.mxu0 %v454
      %568 = vmatpush.msra.mxu0 %v452
      %569 = vmatpush.msra.mxu0 %v450
      %570 = vmatpush.msra.mxu0 %v448
      %571 = vmatpush.msra.mxu0 %v446
      %572 = vmatpush.msra.mxu0 %v444
      %573 = vmatpush.msra.mxu0 %v442
      %574 = vmatpush.msra.mxu0 %v440
      %575 = vmatpush.msra.mxu0 %v438
      %576 = vmatpush.msra.mxu0 %v436
      %577 = vmatpush.msra.mxu0 %v434
      %578 = vmatmul.f32.gmra.mxu0 %v414
      %v579 = vpop.f32.mrf.mxu0
      %v580 = vadd.f32 0.0, %v579
      %581 = vdwg.mxu0
      %582 = vmatpush.msra.mxu0 %v496
      %583 = vmatpush.msra.mxu0 %v494
      %584 = vmatpush.msra.mxu0 %v492
      %585 = vmatpush.msra.mxu0 %v490
      %586 = vmatpush.msra.mxu0 %v488
      %587 = vmatpush.msra.mxu0 %v486
      %588 = vmatpush.msra.mxu0 %v484
      %589 = vmatpush.msra.mxu0 %v482
      %590 = vmatpush.msra.mxu0 %v480
      %591 = vmatpush.msra.mxu0 %v478
      %592 = vmatpush.msra.mxu0 %v476
      %593 = vmatpush.msra.mxu0 %v474
      %594 = vmatpush.msra.mxu0 %v472
      %595 = vmatpush.msra.mxu0 %v470
      %596 = vmatpush.msra.mxu0 %v468
      %597 = vmatpush.msra.mxu0 %v466
      %598 = vmatmul.f32.gmra.mxu0 %v415
      %v599 = vpop.f32.mrf.mxu0
      %v600 = vadd.f32 %v580, %v599
      %601 = vdwg.mxu0
      %602 = vmatpush.msra.mxu0 %v528
      %603 = vmatpush.msra.mxu0 %v526
      %604 = vmatpush.msra.mxu0 %v524
      %605 = vmatpush.msra.mxu0 %v522
      %606 = vmatpush.msra.mxu0 %v520
      %607 = vmatpush.msra.mxu0 %v518
      %608 = vmatpush.msra.mxu0 %v516
      %609 = vmatpush.msra.mxu0 %v514
      %610 = vmatpush.msra.mxu0 %v512
      %611 = vmatpush.msra.mxu0 %v510
      %612 = vmatpush.msra.mxu0 %v508
      %613 = vmatpush.msra.mxu0 %v506
      %614 = vmatpush.msra.mxu0 %v504
      %615 = vmatpush.msra.mxu0 %v502
      %616 = vmatpush.msra.mxu0 %v500
      %617 = vmatpush.msra.mxu0 %v498
      %618 = vmatmul.f32.gmra.mxu0 %v424
      %v619 = vpop.f32.mrf.mxu0
      %v620 = vadd.f32 %v600, %v619
      %621 = vdwg.mxu0
      %622 = vmatpush.msra.mxu0 %v560
      %623 = vmatpush.msra.mxu0 %v558
      %624 = vmatpush.msra.mxu0 %v556
      %625 = vmatpush.msra.mxu0 %v554
      %626 = vmatpush.msra.mxu0 %v552
      %627 = vmatpush.msra.mxu0 %v550
      %628 = vmatpush.msra.mxu0 %v548
      %629 = vmatpush.msra.mxu0 %v546
      %630 = vmatpush.msra.mxu0 %v544
      %631 = vmatpush.msra.mxu0 %v542
      %632 = vmatpush.msra.mxu0 %v540
      %633 = vmatpush.msra.mxu0 %v538
      %634 = vmatpush.msra.mxu0 %v536
      %635 = vmatpush.msra.mxu0 %v534
      %636 = vmatpush.msra.mxu0 %v532
      %637 = vmatpush.msra.mxu0 %v530
      %638 = vmatmul.f32.gmra.mxu0 %v433
      %v639 = vpop.f32.mrf.mxu0
      %v640 = vadd.f32 %v620, %v639
      %641 = vdwg.mxu0
      %642 = vmatpush.msra.mxu0 %v465
      %643 = vmatpush.msra.mxu0 %v463
      %644 = vmatpush.msra.mxu0 %v461
      %645 = vmatpush.msra.mxu0 %v459
      %646 = vmatpush.msra.mxu0 %v457
      %647 = vmatpush.msra.mxu0 %v455
      %648 = vmatpush.msra.mxu0 %v453
      %649 = vmatpush.msra.mxu0 %v451
      %650 = vmatpush.msra.mxu0 %v449
      %651 = vmatpush.msra.mxu0 %v447
      %652 = vmatpush.msra.mxu0 %v445
      %653 = vmatpush.msra.mxu0 %v443
      %654 = vmatpush.msra.mxu0 %v441
      %655 = vmatpush.msra.mxu0 %v439
      %656 = vmatpush.msra.mxu0 %v437
      %657 = vmatpush.msra.mxu0 %v435
      %658 = vmatmul.f32.gmra.mxu0 %v414
      %v659 = vpop.f32.mrf.mxu0
      %v660 = vadd.f32 0.0, %v659
      %661 = vdwg.mxu0
      %662 = vmatpush.msra.mxu0 %v497
      %663 = vmatpush.msra.mxu0 %v495
      %664 = vmatpush.msra.mxu0 %v493
      %665 = vmatpush.msra.mxu0 %v491
      %666 = vmatpush.msra.mxu0 %v489
      %667 = vmatpush.msra.mxu0 %v487
      %668 = vmatpush.msra.mxu0 %v485
      %669 = vmatpush.msra.mxu0 %v483
      %670 = vmatpush.msra.mxu0 %v481
      %671 = vmatpush.msra.mxu0 %v479
      %672 = vmatpush.msra.mxu0 %v477
      %673 = vmatpush.msra.mxu0 %v475
      %674 = vmatpush.msra.mxu0 %v473
      %675 = vmatpush.msra.mxu0 %v471
      %676 = vmatpush.msra.mxu0 %v469
      %677 = vmatpush.msra.mxu0 %v467
      %678 = vmatmul.f32.gmra.mxu0 %v415
      %v679 = vpop.f32.mrf.mxu0
      %v680 = vadd.f32 %v660, %v679
      %681 = vdwg.mxu0
      %682 = vmatpush.msra.mxu0 %v529
      %683 = vmatpush.msra.mxu0 %v527
      %684 = vmatpush.msra.mxu0 %v525
      %685 = vmatpush.msra.mxu0 %v523
      %686 = vmatpush.msra.mxu0 %v521
      %687 = vmatpush.msra.mxu0 %v519
      %688 = vmatpush.msra.mxu0 %v517
      %689 = vmatpush.msra.mxu0 %v515
      %690 = vmatpush.msra.mxu0 %v513
      %691 = vmatpush.msra.mxu0 %v511
      %692 = vmatpush.msra.mxu0 %v509
      %693 = vmatpush.msra.mxu0 %v507
      %694 = vmatpush.msra.mxu0 %v505
      %695 = vmatpush.msra.mxu0 %v503
      %696 = vmatpush.msra.mxu0 %v501
      %697 = vmatpush.msra.mxu0 %v499
      %698 = vmatmul.f32.gmra.mxu0 %v424
      %v699 = vpop.f32.mrf.mxu0
      %v700 = vadd.f32 %v680, %v699
      %701 = vdwg.mxu0
      %702 = vmatpush.msra.mxu0 %v561
      %703 = vmatpush.msra.mxu0 %v559
      %704 = vmatpush.msra.mxu0 %v557
      %705 = vmatpush.msra.mxu0 %v555
      %706 = vmatpush.msra.mxu0 %v553
      %707 = vmatpush.msra.mxu0 %v551
      %708 = vmatpush.msra.mxu0 %v549
      %709 = vmatpush.msra.mxu0 %v547
      %710 = vmatpush.msra.mxu0 %v545
      %711 = vmatpush.msra.mxu0 %v543
      %712 = vmatpush.msra.mxu0 %v541
      %713 = vmatpush.msra.mxu0 %v539
      %714 = vmatpush.msra.mxu0 %v537
      %715 = vmatpush.msra.mxu0 %v535
      %716 = vmatpush.msra.mxu0 %v533
      %717 = vmatpush.msra.mxu0 %v531
      %718 = vmatmul.f32.gmra.mxu0 %v433
      %v719 = vpop.f32.mrf.mxu0
      %v720 = vadd.f32 %v700, %v719
      %721 = vdwg.mxu0
      %v722 = vxor.u32 %v640, 2147483648
      %v723 = vxor.u32 %v720, 2147483648
      %v724 = vmul.f32 %v722, 1.442695
      %v725 = vpow.pop %v724
      %v726 = vmul.f32 %v723, 1.442695
      %v727 = vpow.pop %v726
      %v728 = vadd.f32 %v725, 1.0
      %v729 = vadd.f32 %v727, 1.0
      %v730 = vrcp.pop %v728
      %v731 = vmul.f32 %v728, %v730
      %v732 = vsub.f32 1.0, %v731
      %v733 = vmul.f32 %v730, %v732
      %v734 = vadd.f32 %v730, %v733
      %vm735 = vweird.f32 %v728
      %vm736 = vweird.f32 %v730
      %vm737 = vmor %vm735, %vm736
      %v738 = vsel %vm737, %v730, %v734
      %v739 = vand.u32 2147483647, %v728
      %vm740 = vcmp.eq.f32.partialorder %v739, 8.507059e+37
      %v741 = vand.u32 %v728, 2147483648
      %v742 = vor.u32 1.1754944e-38, %v741
      %v743 = vsel %vm740, %v742, %v738
      %v744 = vmul.f32 1.0, %v743
      %v745 = vrcp.pop %v729
      %v746 = vmul.f32 %v729, %v745
      %v747 = vsub.f32 1.0, %v746
      %v748 = vmul.f32 %v745, %v747
      %v749 = vadd.f32 %v745, %v748
      %vm750 = vweird.f32 %v729
      %vm751 = vweird.f32 %v745
      %vm752 = vmor %vm750, %vm751
      %v753 = vsel %vm752, %v745, %v749
      %v754 = vand.u32 2147483647, %v729
      %vm755 = vcmp.eq.f32.partialorder %v754, 8.507059e+37
      %v756 = vand.u32 %v729, 2147483648
      %v757 = vor.u32 1.1754944e-38, %v756
      %v758 = vsel %vm755, %v757, %v753
      %v759 = vmul.f32 1.0, %v758
      %v760 = vperm.slane %v744, 0
      %v761 = vperm.slane %v759, 0
      %v762 = vmul.f32 %v381, %v760
      %v763 = vmul.f32 %v382, %v761
      %v764 = vmul.f32 %v383, %v760
      %v765 = vmul.f32 %v384, %v761
      %v766 = vmul.f32 %v385, %v760
      %v767 = vmul.f32 %v386, %v761
      %v768 = vmul.f32 %v387, %v760
      %v769 = vmul.f32 %v388, %v761
      %770 = vst [vmem:[%s197] sm:$0xff] %v762
      %771 = vst [vmem:[%s197 + $0x8] sm:$0xff] %v763
      %772 = vst [vmem:[%s197 + $0x10] sm:$0xff] %v764
      %773 = vst [vmem:[%s197 + $0x18] sm:$0xff] %v765
      %774 = vst [vmem:[%s197 + $0x20] sm:$0xff] %v766
      %775 = vst [vmem:[%s197 + $0x28] sm:$0xff] %v767
      %776 = vst [vmem:[%s197 + $0x30] sm:$0xff] %v768
      %777 = vst [vmem:[%s197 + $0x38] sm:$0xff] %v769
      %p778 = scmp.lt.s32.totalorder %s15, 1
      %s779 = scalar_select %p778, %s15, 1
      %s780 = smul.addr %s779, 8
      %s781 = smul.addr %s780, 8
      %s782 = scalar_lea.vmem %s4, %s781
      // Predicated region
      $region37: #{cbam_forward.1} parent=35 // pred_check
        %p783 = pneg %p122
      $region38: #{cbam_forward.1} parent=35 // pred_check_branch
        %785 = sbr.rel (%p783) target = $region40
      $region39: #{cbam_forward.1} parent=35 // pred_region
        _
      $region40: #{cbam_forward.1} parent=35 // pred_fallthru
        _
    $region36: #{cbam_forward.1} parent=5 // pred_fallthru
      _
    %p786 = scmp.le.s32.totalorder 2, %s10
    // Predicated region
    $region41: #{cbam_forward.1} parent=5 // pred_check
      %p787 = pneg %p786
    $region42: #{cbam_forward.1} parent=5 // pred_check_branch
      %789 = sbr.rel (%p787) target = $region44
    $region43: #{cbam_forward.1} parent=5 // pred_region
      %s790 = ssub.s32 %s10, 2
      // Predicated region
      $region45: #{cbam_forward.1} parent=43 // pred_check
        %p791 = pneg %p128
      $region46: #{cbam_forward.1} parent=43 // pred_check_branch
        %793 = sbr.rel (%p791) target = $region48
      $region47: #{cbam_forward.1} parent=43 // pred_region
        %p794 = scmp.lt.s32.totalorder %s16, 1
        %s795 = scalar_select %p794, %s16, 1
        %s796 = smul.addr %s795, 8
        %s797 = smul.addr %s796, 8
        %s798 = scalar_lea.vmem %s4, %s797
      $region48: #{cbam_forward.1} parent=43 // pred_fallthru
        _
    $region44: #{cbam_forward.1} parent=5 // pred_fallthru
      _
  $region6: #{cbam_forward.1} parent=0 // loop_footer
    %s14 = sadd.s32 1, %s10
  $region7: #{cbam_forward.1} parent=0 // loop_footer_branch
    %9 = sbr.rel target = $region3
  $region8: #{cbam_forward.1} parent=0 // loop_exit
    _

</llo_original>
